<compile_context>
chip_gen: v6e
topology: v6e:2x2x1
jax: 0.10.0
libtpu: 0.0.40
codegen_flags: <defaults>
</compile_context>

<pallas_src>
import functools

import jax
import jax.numpy as jnp
from jax import lax
from jax.experimental import pallas as pl
from jax.experimental.pallas import tpu as pltpu


# ------------------------------ small helpers ---------------------------------

def _row_tile(total_rows, target=512):
    """Largest multiple-of-8 divisor of total_rows <= target that still leaves a
    grid of >= 2 steps (pipelining + 2-TC sharding on v7x).  Falls back to the
    full extent (always layout-legal) only for tiny/awkward row counts."""
    if total_rows <= 8:
        return total_rows
    best = None
    limit = min(total_rows // 2, target)
    t = 8
    while t <= limit:
        if total_rows % t == 0:
            best = t
        t += 8
    return best if best is not None else total_rows


def _vmem_limit_bytes():
    # 128 MiB VMEM on v5e/v6e, 64 MiB on v7x -> keep explicit headroom.
    try:
        cap = pltpu.get_tpu_info().vmem_capacity_bytes
    except Exception:
        cap = 128 * 1024 * 1024
    return int(min(96 * 1024 * 1024, cap * 3 // 4))


# ------------------------------- Pallas kernels --------------------------------

def ln_kv_kernel(x_ref, g_ref, b_ref, w_ref, kv_ref, *, eps, kk):
    """Fused LayerNorm + kxk/stride-k conv (to_kv).

    x_ref : (kk, TM, C)  -- conv offsets lead, so x_ref[o] is a free index.
    w_ref : (kk, C, 2*inner);  kv_ref : (TM, 2*inner)
    """
    gamma = g_ref[...].astype(jnp.float32)
    beta = b_ref[...].astype(jnp.float32)
    acc = jnp.zeros(kv_ref.shape, jnp.float32)
    for o in range(kk):                         # kk = k*k, small static trip count
        xo = x_ref[o].astype(jnp.float32)       # (TM, C), free leading-dim index
        mean = jnp.mean(xo, axis=-1, keepdims=True)
        var = jnp.mean(jnp.square(xo - mean), axis=-1, keepdims=True)
        xn = (xo - mean) * lax.rsqrt(var + eps) * gamma + beta
        acc = acc + jnp.dot(xn, w_ref[o].astype(jnp.float32),
                            preferred_element_type=jnp.float32)
    kv_ref[...] = acc.astype(kv_ref.dtype)


def attention_kernel(x_ref, k_ref, v_ref, g_ref, b_ref, wq_ref, wo_ref, bo_ref,
                     o_ref, *, heads, eps):
    """Fused LayerNorm + to_q + attention + to_out (+ bias).

    x_ref : (1, TQ, C) raw tokens.       k_ref/v_ref : (1, heads, Nk, dh)
    wq_ref: (heads, C, dh) (scale pre-folded)   wo_ref : (heads, dh, dim)
    o_ref : (1, TQ, dim)
    """
    x = x_ref[0].astype(jnp.float32)                                   # (TQ, C)
    mean = jnp.mean(x, axis=-1, keepdims=True)
    var = jnp.mean(jnp.square(x - mean), axis=-1, keepdims=True)
    xn = (x - mean) * lax.rsqrt(var + eps) * g_ref[...].astype(jnp.float32) \
         + b_ref[...].astype(jnp.float32)

    acc = jnp.zeros((x_ref.shape[1], o_ref.shape[2]), jnp.float32)     # (TQ, dim)
    for h in range(heads):                  # every per-head access is leading-dim
        qh = jnp.dot(xn, wq_ref[h].astype(jnp.float32),
                     preferred_element_type=jnp.float32)               # (TQ, dh)
        kh = k_ref[0, h].astype(jnp.float32)                           # (Nk, dh)
        vh = v_ref[0, h].astype(jnp.float32)
        dots = lax.dot_general(qh, kh, (((1,), (1,)), ((), ())),
                               preferred_element_type=jnp.float32)     # (TQ, Nk)
        dots = dots - jnp.max(dots, axis=-1, keepdims=True)
        e = jnp.exp(dots)
        inv = pl.reciprocal(jnp.sum(e, axis=-1, keepdims=True), approx=True)
        ctx = jnp.dot(e, vh, preferred_element_type=jnp.float32) * inv  # (TQ, dh)
        acc = acc + jnp.dot(ctx, wo_ref[h].astype(jnp.float32),
                            preferred_element_type=jnp.float32)         # (TQ, dim)
    o_ref[0] = (acc + bo_ref[...].astype(jnp.float32)).astype(o_ref.dtype)


# ------------------------------ Pallas wrappers --------------------------------

def pallas_ln_kv(x_kv, g, b, wkv_off, eps=1e-5):
    kk, M, C = x_kv.shape
    N = wkv_off.shape[-1]
    tm = _row_tile(M, target=1024)
    return pl.pallas_call(
        functools.partial(ln_kv_kernel, eps=eps, kk=kk),
        out_shape=jax.ShapeDtypeStruct((M, N), x_kv.dtype),
        grid=(M // tm,),
        in_specs=[
            pl.BlockSpec((kk, tm, C), lambda i: (0, i, 0)),
            pl.BlockSpec((1, C), lambda i: (0, 0)),
            pl.BlockSpec((1, C), lambda i: (0, 0)),
            pl.BlockSpec((kk, C, N), lambda i: (0, 0, 0)),
        ],
        out_specs=pl.BlockSpec((tm, N), lambda i: (i, 0)),
        compiler_params=pltpu.CompilerParams(
            dimension_semantics=("parallel",),
            vmem_limit_bytes=_vmem_limit_bytes()),
    )(x_kv, g, b, wkv_off)


def pallas_attention(x3, k4, v4, g, b, wq3, wo3, bo, eps=1e-5):
    B, Nq, C = x3.shape
    _, heads, Nk, dh = k4.shape
    dim_out = wo3.shape[-1]
    tq = _row_tile(Nq, target=512)
    return pl.pallas_call(
        functools.partial(attention_kernel, heads=heads, eps=eps),
        out_shape=jax.ShapeDtypeStruct((B, Nq, dim_out), x3.dtype),
        grid=(B, Nq // tq),
        in_specs=[
            pl.BlockSpec((1, tq, C), lambda i, j: (i, j, 0)),
            pl.BlockSpec((1, heads, Nk, dh), lambda i, j: (i, 0, 0, 0)),
            pl.BlockSpec((1, heads, Nk, dh), lambda i, j: (i, 0, 0, 0)),
            pl.BlockSpec((1, C), lambda i, j: (0, 0)),
            pl.BlockSpec((1, C), lambda i, j: (0, 0)),
            pl.BlockSpec((heads, C, dh), lambda i, j: (0, 0, 0)),
            pl.BlockSpec((heads, dh, dim_out), lambda i, j: (0, 0, 0)),
            pl.BlockSpec((1, dim_out), lambda i, j: (0, 0)),
        ],
        out_specs=pl.BlockSpec((1, tq, dim_out), lambda i, j: (i, j, 0)),
        compiler_params=pltpu.CompilerParams(
            dimension_semantics=("parallel", "parallel"),
            vmem_limit_bytes=_vmem_limit_bytes()),
    )(x3, k4, v4, g, b, wq3, wo3, bo)


# ---------------------------- GlobalAttention forward --------------------------

def global_attention_forward(x, params, *, heads, dim_head, kconv, eps=1e-5):
    b, dim, H, W = x.shape
    inner = heads * dim_head
    Ny, Nx = H // kconv, W // kconv
    n_tok, n_kv = H * W, Ny * Nx
    scale = dim_head ** -0.5

    # Single layout change at entry: NCHW -> token-major NHWC.
    x_nhwc = jnp.transpose(x, (0, 2, 3, 1))                        # (b, H, W, C)
    x3 = x_nhwc.reshape(b, n_tok, dim)

    # kv path: put the k*k conv offsets first so the kernel indexes them for free
    # (one XLA transpose of x replaces per-tile sublane-strided gathers).
    x6 = x_nhwc.reshape(b, Ny, kconv, Nx, kconv, dim)
    x_kv = jnp.transpose(x6, (2, 4, 0, 1, 3, 5)).reshape(
        kconv * kconv, b * n_kv, dim)                              # (k*k, b*Ny*Nx, C)

    g = params["ln_g"].reshape(1, dim)
    beta = params["ln_b"].reshape(1, dim)

    # to_kv weight as (k*k, C, 2*inner), offset order matching x_kv.
    wkv_off = jnp.transpose(params["wkv"], (2, 3, 1, 0)).reshape(
        kconv * kconv, dim, 2 * inner)
    kv = pallas_ln_kv(x_kv, g, beta, wkv_off, eps=eps)             # (b*n_kv, 2*inner)

    # Head-major K / V (tiny, spatially reduced tensor -> cheap XLA transpose).
    kv5 = jnp.transpose(kv.reshape(b, n_kv, 2, heads, dim_head), (2, 0, 3, 1, 4))
    k4, v4 = kv5[0], kv5[1]                                        # (b, heads, n_kv, dh)

    # Per-head to_q weight with `scale` folded in, per-head to_out weight, bias.
    wq3 = jnp.transpose((params["wq"].reshape(inner, dim) * scale)
                        .reshape(heads, dim_head, dim), (0, 2, 1))  # (heads, C, dh)
    wo3 = params["wo"].reshape(dim, inner).T.reshape(heads, dim_head, dim)
    bo = params["bo"].reshape(1, dim)

    y3 = pallas_attention(x3, k4, v4, g, beta, wq3, wo3, bo, eps=eps)  # (b, n_tok, dim)
    y = y3.reshape(b, H, W, dim)
    return jnp.transpose(y, (0, 3, 1, 2))                          # back to NCHW
    # TODO(synk): for awkward H/W/b, switch the tile choosers to pl.cdiv grids
    # with masked tails instead of the full-extent fallback.


# ------------------------------- Pure-JAX reference ----------------------------

def _ref_forward(x, params, *, heads, dim_head, kconv):
    b, dim, H, W = x.shape
    inner = heads * dim_head
    eps = 1e-5
    mean = jnp.mean(x, axis=1, keepdims=True)
    var = jnp.mean((x - mean) ** 2, axis=1, keepdims=True)
    xn = (x - mean) / jnp.sqrt(var + eps) * params["ln_g"] + params["ln_b"]
    dn = ("NCHW", "OIHW", "NCHW")
    q = jax.lax.conv_general_dilated(xn, params["wq"], (1, 1), "VALID",
                                     dimension_numbers=dn)
    kv = jax.lax.conv_general_dilated(xn, params["wkv"], (kconv, kconv), "VALID",
                                      dimension_numbers=dn)
    kk, vv = kv[:, :inner], kv[:, inner:]

    def rearr(t):
        bb, _, hh, ww = t.shape
        t = t.reshape(bb, heads, dim_head, hh * ww)
        return jnp.transpose(t, (0, 1, 3, 2)).reshape(bb * heads, hh * ww, dim_head)

    qr, kr, vr = rearr(q), rearr(kk), rearr(vv)
    dots = jnp.einsum("bid,bjd->bij", qr, kr) * (dim_head ** -0.5)
    attn = jax.nn.softmax(dots, axis=-1)
    out = jnp.einsum("bij,bjd->bid", attn, vr)
    out = out.reshape(b, heads, H * W, dim_head)
    out = jnp.transpose(out, (0, 1, 3, 2)).reshape(b, inner, H, W)
    y = jax.lax.conv_general_dilated(out, params["wo"], (1, 1), "VALID",
                                     dimension_numbers=dn)
    return y + params["bo"].reshape(1, dim, 1, 1)


# -------------------------------------- main ------------------------------------

if __name__ == "__main__":
    dim, heads, dim_head, kconv = 16, 2, 8, 2
    inner = heads * dim_head
    b, H, W = 2, 8, 8

    key = jax.random.PRNGKey(0)
    k1, k2, k3, k4, kx = jax.random.split(key, 5)
    params = {
        "ln_g": jnp.ones((1, dim, 1, 1), jnp.float32),
        "ln_b": jnp.zeros((1, dim, 1, 1), jnp.float32),
        "wq": 0.05 * jax.random.normal(k1, (inner, dim, 1, 1), jnp.float32),
        "wkv": 0.05 * jax.random.normal(k2, (2 * inner, dim, kconv, kconv), jnp.float32),
        "wo": 0.05 * jax.random.normal(k3, (dim, inner, 1, 1), jnp.float32),
        "bo": 0.05 * jax.random.normal(k4, (dim,), jnp.float32),
    }
    x = jax.random.normal(kx, (b, dim, H, W), jnp.float32)

    out = global_attention_forward(x, params, heads=heads, dim_head=dim_head,
                                   kconv=kconv)
    out = jax.block_until_ready(out)

    ref = jax.block_until_ready(
        _ref_forward(x, params, heads=heads, dim_head=dim_head, kconv=kconv))
    assert out.shape == (b, dim, H, W)
    assert jnp.max(jnp.abs(out - ref)) < 2e-2

    print("KERNEL_OK")
</pallas_src>

<mosaic_0001>
module attributes {stable_mosaic.version = 11 : i64} {
  func.func @ln_kv_kernel(%arg0: i32, %arg1: memref<4x16x16xf32, #tpu.memory_space<vmem>>, %arg2: memref<1x16xf32, #tpu.memory_space<vmem>>, %arg3: memref<1x16xf32, #tpu.memory_space<vmem>>, %arg4: memref<4x16x32xf32, #tpu.memory_space<vmem>>, %arg5: memref<16x32xf32, #tpu.memory_space<vmem>>) attributes {dimension_semantics = [#tpu.dimension_semantics<parallel>], iteration_bounds = array<i64: 2>, scalar_prefetch = 0 : i64, scratch_operands = 0 : i64, tpu.core_type = #tpu.core_type<tc>, window_params = [{transform_indices = @transform_0, window_bounds = array<i64: 4, 16, 16>}, {pipeline_mode = #tpu.pipeline_mode<synchronous>, transform_indices = @transform_1, window_bounds = array<i64: 1, 16>}, {pipeline_mode = #tpu.pipeline_mode<synchronous>, transform_indices = @transform_2, window_bounds = array<i64: 1, 16>}, {pipeline_mode = #tpu.pipeline_mode<synchronous>, transform_indices = @transform_3, window_bounds = array<i64: 4, 16, 32>}, {transform_indices = @transform_4, window_bounds = array<i64: 16, 32>}]} {
    %c0 = arith.constant 0 : index
    %c0_0 = arith.constant 0 : index
    %0 = vector.load %arg2[%c0, %c0_0] : memref<1x16xf32, #tpu.memory_space<vmem>>, vector<1x16xf32>
    %c0_1 = arith.constant 0 : index
    %c0_2 = arith.constant 0 : index
    %1 = vector.load %arg3[%c0_1, %c0_2] : memref<1x16xf32, #tpu.memory_space<vmem>>, vector<1x16xf32>
    %cst = arith.constant 0.000000e+00 : f32
    %2 = vector.broadcast %cst : f32 to vector<16x32xf32>
    %c0_3 = arith.constant 0 : index
    %c0_4 = arith.constant 0 : index
    %c0_5 = arith.constant 0 : index
    %3 = vector.load %arg1[%c0_3, %c0_4, %c0_5] : memref<4x16x16xf32, #tpu.memory_space<vmem>>, vector<1x16x16xf32>
    %4 = vector.shape_cast %3 : vector<1x16x16xf32> to vector<16x16xf32>
    %cst_6 = arith.constant dense<0.000000e+00> : vector<16xf32>
    %5 = vector.multi_reduction <add>, %4, %cst_6 [1] : vector<16x16xf32> to vector<16xf32>
    %6 = vector.shape_cast %5 : vector<16xf32> to vector<16x1xf32>
    %cst_7 = arith.constant 1.600000e+01 : f32
    %7 = vector.broadcast %cst_7 : f32 to vector<16x1xf32>
    %8 = arith.divf %6, %7 : vector<16x1xf32>
    %9 = vector.broadcast %8 : vector<16x1xf32> to vector<16x16xf32>
    %10 = arith.subf %4, %9 : vector<16x16xf32>
    %11 = arith.mulf %10, %10 : vector<16x16xf32>
    %cst_8 = arith.constant dense<0.000000e+00> : vector<16xf32>
    %12 = vector.multi_reduction <add>, %11, %cst_8 [1] : vector<16x16xf32> to vector<16xf32>
    %13 = vector.shape_cast %12 : vector<16xf32> to vector<16x1xf32>
    %cst_9 = arith.constant 1.600000e+01 : f32
    %14 = vector.broadcast %cst_9 : f32 to vector<16x1xf32>
    %15 = arith.divf %13, %14 : vector<16x1xf32>
    %16 = vector.broadcast %8 : vector<16x1xf32> to vector<16x16xf32>
    %17 = arith.subf %4, %16 : vector<16x16xf32>
    %cst_10 = arith.constant 9.99999974E-6 : f32
    %18 = vector.broadcast %cst_10 : f32 to vector<16x1xf32>
    %19 = arith.addf %15, %18 : vector<16x1xf32>
    %20 = math.rsqrt %19 : vector<16x1xf32>
    %21 = vector.broadcast %20 : vector<16x1xf32> to vector<16x16xf32>
    %22 = arith.mulf %17, %21 : vector<16x16xf32>
    %23 = vector.broadcast %0 : vector<1x16xf32> to vector<16x16xf32>
    %24 = arith.mulf %22, %23 : vector<16x16xf32>
    %25 = vector.broadcast %1 : vector<1x16xf32> to vector<16x16xf32>
    %26 = arith.addf %24, %25 : vector<16x16xf32>
    %c0_11 = arith.constant 0 : index
    %c0_12 = arith.constant 0 : index
    %c0_13 = arith.constant 0 : index
    %27 = vector.load %arg4[%c0_11, %c0_12, %c0_13] : memref<4x16x32xf32, #tpu.memory_space<vmem>>, vector<1x16x32xf32>
    %28 = vector.shape_cast %27 : vector<1x16x32xf32> to vector<16x32xf32>
    %cst_14 = arith.constant dense<0.000000e+00> : vector<16x32xf32>
    %29 = tpu.matmul %26, %28, %cst_14 {dimension_numbers = #tpu.dot_dimension_numbers<[1], [0], [0], [1], [0, 0, 1, 1], [], []>} : vector<16x16xf32>, vector<16x32xf32>, vector<16x32xf32> -> vector<16x32xf32>
    %30 = arith.addf %2, %29 : vector<16x32xf32>
    %c1 = arith.constant 1 : index
    %c0_15 = arith.constant 0 : index
    %c0_16 = arith.constant 0 : index
    %31 = vector.load %arg1[%c1, %c0_15, %c0_16] : memref<4x16x16xf32, #tpu.memory_space<vmem>>, vector<1x16x16xf32>
    %32 = vector.shape_cast %31 : vector<1x16x16xf32> to vector<16x16xf32>
    %cst_17 = arith.constant dense<0.000000e+00> : vector<16xf32>
    %33 = vector.multi_reduction <add>, %32, %cst_17 [1] : vector<16x16xf32> to vector<16xf32>
    %34 = vector.shape_cast %33 : vector<16xf32> to vector<16x1xf32>
    %cst_18 = arith.constant 1.600000e+01 : f32
    %35 = vector.broadcast %cst_18 : f32 to vector<16x1xf32>
    %36 = arith.divf %34, %35 : vector<16x1xf32>
    %37 = vector.broadcast %36 : vector<16x1xf32> to vector<16x16xf32>
    %38 = arith.subf %32, %37 : vector<16x16xf32>
    %39 = arith.mulf %38, %38 : vector<16x16xf32>
    %cst_19 = arith.constant dense<0.000000e+00> : vector<16xf32>
    %40 = vector.multi_reduction <add>, %39, %cst_19 [1] : vector<16x16xf32> to vector<16xf32>
    %41 = vector.shape_cast %40 : vector<16xf32> to vector<16x1xf32>
    %cst_20 = arith.constant 1.600000e+01 : f32
    %42 = vector.broadcast %cst_20 : f32 to vector<16x1xf32>
    %43 = arith.divf %41, %42 : vector<16x1xf32>
    %44 = vector.broadcast %36 : vector<16x1xf32> to vector<16x16xf32>
    %45 = arith.subf %32, %44 : vector<16x16xf32>
    %cst_21 = arith.constant 9.99999974E-6 : f32
    %46 = vector.broadcast %cst_21 : f32 to vector<16x1xf32>
    %47 = arith.addf %43, %46 : vector<16x1xf32>
    %48 = math.rsqrt %47 : vector<16x1xf32>
    %49 = vector.broadcast %48 : vector<16x1xf32> to vector<16x16xf32>
    %50 = arith.mulf %45, %49 : vector<16x16xf32>
    %51 = vector.broadcast %0 : vector<1x16xf32> to vector<16x16xf32>
    %52 = arith.mulf %50, %51 : vector<16x16xf32>
    %53 = vector.broadcast %1 : vector<1x16xf32> to vector<16x16xf32>
    %54 = arith.addf %52, %53 : vector<16x16xf32>
    %c1_22 = arith.constant 1 : index
    %c0_23 = arith.constant 0 : index
    %c0_24 = arith.constant 0 : index
    %55 = vector.load %arg4[%c1_22, %c0_23, %c0_24] : memref<4x16x32xf32, #tpu.memory_space<vmem>>, vector<1x16x32xf32>
    %56 = vector.shape_cast %55 : vector<1x16x32xf32> to vector<16x32xf32>
    %cst_25 = arith.constant dense<0.000000e+00> : vector<16x32xf32>
    %57 = tpu.matmul %54, %56, %cst_25 {dimension_numbers = #tpu.dot_dimension_numbers<[1], [0], [0], [1], [0, 0, 1, 1], [], []>} : vector<16x16xf32>, vector<16x32xf32>, vector<16x32xf32> -> vector<16x32xf32>
    %58 = arith.addf %30, %57 : vector<16x32xf32>
    %c2 = arith.constant 2 : index
    %c0_26 = arith.constant 0 : index
    %c0_27 = arith.constant 0 : index
    %59 = vector.load %arg1[%c2, %c0_26, %c0_27] : memref<4x16x16xf32, #tpu.memory_space<vmem>>, vector<1x16x16xf32>
    %60 = vector.shape_cast %59 : vector<1x16x16xf32> to vector<16x16xf32>
    %cst_28 = arith.constant dense<0.000000e+00> : vector<16xf32>
    %61 = vector.multi_reduction <add>, %60, %cst_28 [1] : vector<16x16xf32> to vector<16xf32>
    %62 = vector.shape_cast %61 : vector<16xf32> to vector<16x1xf32>
    %cst_29 = arith.constant 1.600000e+01 : f32
    %63 = vector.broadcast %cst_29 : f32 to vector<16x1xf32>
    %64 = arith.divf %62, %63 : vector<16x1xf32>
    %65 = vector.broadcast %64 : vector<16x1xf32> to vector<16x16xf32>
    %66 = arith.subf %60, %65 : vector<16x16xf32>
    %67 = arith.mulf %66, %66 : vector<16x16xf32>
    %cst_30 = arith.constant dense<0.000000e+00> : vector<16xf32>
    %68 = vector.multi_reduction <add>, %67, %cst_30 [1] : vector<16x16xf32> to vector<16xf32>
    %69 = vector.shape_cast %68 : vector<16xf32> to vector<16x1xf32>
    %cst_31 = arith.constant 1.600000e+01 : f32
    %70 = vector.broadcast %cst_31 : f32 to vector<16x1xf32>
    %71 = arith.divf %69, %70 : vector<16x1xf32>
    %72 = vector.broadcast %64 : vector<16x1xf32> to vector<16x16xf32>
    %73 = arith.subf %60, %72 : vector<16x16xf32>
    %cst_32 = arith.constant 9.99999974E-6 : f32
    %74 = vector.broadcast %cst_32 : f32 to vector<16x1xf32>
    %75 = arith.addf %71, %74 : vector<16x1xf32>
    %76 = math.rsqrt %75 : vector<16x1xf32>
    %77 = vector.broadcast %76 : vector<16x1xf32> to vector<16x16xf32>
    %78 = arith.mulf %73, %77 : vector<16x16xf32>
    %79 = vector.broadcast %0 : vector<1x16xf32> to vector<16x16xf32>
    %80 = arith.mulf %78, %79 : vector<16x16xf32>
    %81 = vector.broadcast %1 : vector<1x16xf32> to vector<16x16xf32>
    %82 = arith.addf %80, %81 : vector<16x16xf32>
    %c2_33 = arith.constant 2 : index
    %c0_34 = arith.constant 0 : index
    %c0_35 = arith.constant 0 : index
    %83 = vector.load %arg4[%c2_33, %c0_34, %c0_35] : memref<4x16x32xf32, #tpu.memory_space<vmem>>, vector<1x16x32xf32>
    %84 = vector.shape_cast %83 : vector<1x16x32xf32> to vector<16x32xf32>
    %cst_36 = arith.constant dense<0.000000e+00> : vector<16x32xf32>
    %85 = tpu.matmul %82, %84, %cst_36 {dimension_numbers = #tpu.dot_dimension_numbers<[1], [0], [0], [1], [0, 0, 1, 1], [], []>} : vector<16x16xf32>, vector<16x32xf32>, vector<16x32xf32> -> vector<16x32xf32>
    %86 = arith.addf %58, %85 : vector<16x32xf32>
    %c3 = arith.constant 3 : index
    %c0_37 = arith.constant 0 : index
    %c0_38 = arith.constant 0 : index
    %87 = vector.load %arg1[%c3, %c0_37, %c0_38] : memref<4x16x16xf32, #tpu.memory_space<vmem>>, vector<1x16x16xf32>
    %88 = vector.shape_cast %87 : vector<1x16x16xf32> to vector<16x16xf32>
    %cst_39 = arith.constant dense<0.000000e+00> : vector<16xf32>
    %89 = vector.multi_reduction <add>, %88, %cst_39 [1] : vector<16x16xf32> to vector<16xf32>
    %90 = vector.shape_cast %89 : vector<16xf32> to vector<16x1xf32>
    %cst_40 = arith.constant 1.600000e+01 : f32
    %91 = vector.broadcast %cst_40 : f32 to vector<16x1xf32>
    %92 = arith.divf %90, %91 : vector<16x1xf32>
    %93 = vector.broadcast %92 : vector<16x1xf32> to vector<16x16xf32>
    %94 = arith.subf %88, %93 : vector<16x16xf32>
    %95 = arith.mulf %94, %94 : vector<16x16xf32>
    %cst_41 = arith.constant dense<0.000000e+00> : vector<16xf32>
    %96 = vector.multi_reduction <add>, %95, %cst_41 [1] : vector<16x16xf32> to vector<16xf32>
    %97 = vector.shape_cast %96 : vector<16xf32> to vector<16x1xf32>
    %cst_42 = arith.constant 1.600000e+01 : f32
    %98 = vector.broadcast %cst_42 : f32 to vector<16x1xf32>
    %99 = arith.divf %97, %98 : vector<16x1xf32>
    %100 = vector.broadcast %92 : vector<16x1xf32> to vector<16x16xf32>
    %101 = arith.subf %88, %100 : vector<16x16xf32>
    %cst_43 = arith.constant 9.99999974E-6 : f32
    %102 = vector.broadcast %cst_43 : f32 to vector<16x1xf32>
    %103 = arith.addf %99, %102 : vector<16x1xf32>
    %104 = math.rsqrt %103 : vector<16x1xf32>
    %105 = vector.broadcast %104 : vector<16x1xf32> to vector<16x16xf32>
    %106 = arith.mulf %101, %105 : vector<16x16xf32>
    %107 = vector.broadcast %0 : vector<1x16xf32> to vector<16x16xf32>
    %108 = arith.mulf %106, %107 : vector<16x16xf32>
    %109 = vector.broadcast %1 : vector<1x16xf32> to vector<16x16xf32>
    %110 = arith.addf %108, %109 : vector<16x16xf32>
    %c3_44 = arith.constant 3 : index
    %c0_45 = arith.constant 0 : index
    %c0_46 = arith.constant 0 : index
    %111 = vector.load %arg4[%c3_44, %c0_45, %c0_46] : memref<4x16x32xf32, #tpu.memory_space<vmem>>, vector<1x16x32xf32>
    %112 = vector.shape_cast %111 : vector<1x16x32xf32> to vector<16x32xf32>
    %cst_47 = arith.constant dense<0.000000e+00> : vector<16x32xf32>
    %113 = tpu.matmul %110, %112, %cst_47 {dimension_numbers = #tpu.dot_dimension_numbers<[1], [0], [0], [1], [0, 0, 1, 1], [], []>} : vector<16x16xf32>, vector<16x32xf32>, vector<16x32xf32> -> vector<16x32xf32>
    %114 = arith.addf %86, %113 : vector<16x32xf32>
    %c0_48 = arith.constant 0 : index
    %c0_49 = arith.constant 0 : index
    %115 = vector.load %arg5[%c0_48, %c0_49] : memref<16x32xf32, #tpu.memory_space<vmem>>, vector<16x32xf32>
    tpu.vector_store %arg5[%c0_48, %c0_49], %114 {strides = array<i32>} : memref<16x32xf32, #tpu.memory_space<vmem>>, vector<16x32xf32>,
    return
  }
  func.func @transform_0(%arg0: i32) -> (i32, i32, i32) {
    %c0_i32 = arith.constant 0 : i32
    %c0_i32_0 = arith.constant 0 : i32
    %c0_i32_1 = arith.constant 0 : i32
    return %c0_i32, %arg0, %c0_i32_0 : i32, i32, i32
  }
  func.func @transform_1(%arg0: i32) -> (i32, i32) {
    %c0_i32 = arith.constant 0 : i32
    %c0_i32_0 = arith.constant 0 : i32
    %c0_i32_1 = arith.constant 0 : i32
    return %c0_i32, %c0_i32_0 : i32, i32
  }
  func.func @transform_2(%arg0: i32) -> (i32, i32) {
    %c0_i32 = arith.constant 0 : i32
    %c0_i32_0 = arith.constant 0 : i32
    %c0_i32_1 = arith.constant 0 : i32
    return %c0_i32, %c0_i32_0 : i32, i32
  }
  func.func @transform_3(%arg0: i32) -> (i32, i32, i32) {
    %c0_i32 = arith.constant 0 : i32
    %c0_i32_0 = arith.constant 0 : i32
    %c0_i32_1 = arith.constant 0 : i32
    %c0_i32_2 = arith.constant 0 : i32
    return %c0_i32, %c0_i32_0, %c0_i32_1 : i32, i32, i32
  }
  func.func @transform_4(%arg0: i32) -> (i32, i32) {
    %c0_i32 = arith.constant 0 : i32
    %c0_i32_0 = arith.constant 0 : i32
    return %arg0, %c0_i32 : i32, i32
  }
}

</mosaic_0001>

<llo_original>
// kernel: tpu_custom_call.1
$region0: #{tpu_custom_call.1}
  #allocation0 [shape = 'u32[]', space=smem, size = 0x4, offset = 0x4, fixed_abs, tag = 'smem constant byte address 0x4 - core index']
  #allocation1 [shape = 'u32[144,128]{1,0:T(1,128)}', space=vmem, size = 0x12000, scoped, tag = 'internal scratch']
  %s0 = inlined_call_operand.vmem [shape: f32[4,32,16], index: 0, kind: input, shape index: {}]
  %s1 = inlined_call_operand.vmem [shape: f32[1,16], index: 1, kind: input, shape index: {}]
  %s2 = inlined_call_operand.vmem [shape: f32[1,16], index: 2, kind: input, shape index: {}]
  %s3 = inlined_call_operand.vmem [shape: f32[4,16,32], index: 3, kind: input, shape index: {}]
  %s4 = inlined_call_operand.hbm [shape: f32[32,32], index: 4, kind: output, shape index: {}]
  %s5 = sld [smem:[#allocation0]]
  $region87: #{tpu_custom_call.1} parent=0
    _
  %s7 = ssub.s32 1, %s5
  %s8 = scalar_select 0, %s7, %s5
  $region1: #{tpu_custom_call.1} parent=0
    #allocation2 [shape = 'u8[65536]{0}', space=vmem, size = 0x10000, scoped, tag = 'input window, operand 0']
    #allocation3 [shape = 'u8[16384]{0}', space=vmem, size = 0x4000, scoped, tag = 'output window, operand 0']
    #allocation4 [shape = 's32[2]{0}', space=sflag, size = 0x8, scoped, tag = 'scoped memory for tpu_custom_call.1']
    %9 = vsyncpa [#allocation4], 0
    %s10 = scalar_lea.sflag [#allocation4], 1
    %11 = vsyncpa %s10, 0
    loop: start=0, step=1, limit=4
    $region2: #{tpu_custom_call.1} parent=1 // loop_pre_header
      _
    $region3: #{tpu_custom_call.1} parent=1 // loop_header
      %s13 = sphi 0, %s17
      %p14 = scmp.ge.s32.totalorder %s13, 4
      %s23 = sphi 0, %s25
      %s26 = sphi 0, %s23
      %s27 = sphi 0, %s26
      %s43 = sphi 0, %s27
      %s47 = sphi 0, %s47
      %s49 = sphi 0, %s47
      %s50 = sphi 0, %s49
      %s64 = sphi 0, %s50
      %s68 = sphi 0, %s68
      %s70 = sphi 0, %s68
      %s71 = sphi 0, %s70
      %s85 = sphi 0, %s71
      %s89 = sphi 0, %s89
      %s91 = sphi 0, %s89
      %s92 = sphi 0, %s91
      %s106 = sphi 0, %s92
      %s112 = sphi 0, %s114
      %s115 = sphi 0, %s112
      %s116 = sphi 0, %s115
      %s132 = sphi 0, %s116
    $region4: #{tpu_custom_call.1} parent=1 // loop_header_branch
      %16 = sbr.rel (%p14) target = $region8
    $region5: #{tpu_custom_call.1} parent=1 // loop_body
      %s18 = ssub.s32 %s13, 1
      %s19 = ssub.s32 %s13, 2
      %s20 = sadd.s32 %s13, 1
      %s21 = ssub.s32 %s13, %s20
      %p22 = scmp.eq.s32.totalorder %s21, 0
      %s24 = sadd.s32 %s23, 1
      %s25 = scalar_select %p22, %s23, %s24
      %p28 = pneg %p22
      %p29 = scmp.eq.s32.totalorder %s13, 1
      %p30 = por %p28, %p29
      %p31 = scmp.ne.s32.totalorder %s23, %s26
      %p32 = scmp.eq.s32.totalorder %s13, 0
      %p33 = por %p31, %p32
      %p34 = scmp.ne.s32.totalorder %s23, %s26
      %p35 = scmp.eq.s32.totalorder %s18, 1
      %p36 = por %p34, %p35
      %p37 = scmp.ne.s32.totalorder %s26, %s27
      %p38 = scmp.eq.s32.totalorder %s18, 0
      %p39 = por %p37, %p38
      %p40 = scmp.ne.s32.totalorder %s26, %s27
      %p41 = scmp.eq.s32.totalorder %s19, 1
      %p42 = por %p40, %p41
      %p44 = scmp.ne.s32.totalorder %s27, %s43
      %p45 = scmp.eq.s32.totalorder %s19, 0
      %p46 = por %p44, %p45
      %s48 = sadd.s32 %s47, 1
      %p51 = scmp.eq.s32.totalorder %s13, 1
      %p52 = scmp.ne.s32.totalorder %s47, %s49
      %p53 = scmp.eq.s32.totalorder %s13, 0
      %p54 = por %p52, %p53
      %p55 = scmp.ne.s32.totalorder %s47, %s49
      %p56 = scmp.eq.s32.totalorder %s18, 1
      %p57 = por %p55, %p56
      %p58 = scmp.ne.s32.totalorder %s49, %s50
      %p59 = scmp.eq.s32.totalorder %s18, 0
      %p60 = por %p58, %p59
      %p61 = scmp.ne.s32.totalorder %s49, %s50
      %p62 = scmp.eq.s32.totalorder %s19, 1
      %p63 = por %p61, %p62
      %p65 = scmp.ne.s32.totalorder %s50, %s64
      %p66 = scmp.eq.s32.totalorder %s19, 0
      %p67 = por %p65, %p66
      %s69 = sadd.s32 %s68, 1
      %p72 = scmp.eq.s32.totalorder %s13, 1
      %p73 = scmp.ne.s32.totalorder %s68, %s70
      %p74 = scmp.eq.s32.totalorder %s13, 0
      %p75 = por %p73, %p74
      %p76 = scmp.ne.s32.totalorder %s68, %s70
      %p77 = scmp.eq.s32.totalorder %s18, 1
      %p78 = por %p76, %p77
      %p79 = scmp.ne.s32.totalorder %s70, %s71
      %p80 = scmp.eq.s32.totalorder %s18, 0
      %p81 = por %p79, %p80
      %p82 = scmp.ne.s32.totalorder %s70, %s71
      %p83 = scmp.eq.s32.totalorder %s19, 1
      %p84 = por %p82, %p83
      %p86 = scmp.ne.s32.totalorder %s71, %s85
      %p87 = scmp.eq.s32.totalorder %s19, 0
      %p88 = por %p86, %p87
      %s90 = sadd.s32 %s89, 1
      %p93 = scmp.eq.s32.totalorder %s13, 1
      %p94 = scmp.ne.s32.totalorder %s89, %s91
      %p95 = scmp.eq.s32.totalorder %s13, 0
      %p96 = por %p94, %p95
      %p97 = scmp.ne.s32.totalorder %s89, %s91
      %p98 = scmp.eq.s32.totalorder %s18, 1
      %p99 = por %p97, %p98
      %p100 = scmp.ne.s32.totalorder %s91, %s92
      %p101 = scmp.eq.s32.totalorder %s18, 0
      %p102 = por %p100, %p101
      %p103 = scmp.ne.s32.totalorder %s91, %s92
      %p104 = scmp.eq.s32.totalorder %s19, 1
      %p105 = por %p103, %p104
      %p107 = scmp.ne.s32.totalorder %s92, %s106
      %p108 = scmp.eq.s32.totalorder %s19, 0
      %p109 = por %p107, %p108
      %s110 = ssub.s32 %s13, %s20
      %p111 = scmp.eq.s32.totalorder %s110, 0
      %s113 = sadd.s32 %s112, 1
      %s114 = scalar_select %p111, %s112, %s113
      %p117 = pneg %p111
      %p118 = scmp.eq.s32.totalorder %s13, 1
      %p119 = por %p117, %p118
      %p120 = scmp.ne.s32.totalorder %s112, %s115
      %p121 = scmp.eq.s32.totalorder %s13, 0
      %p122 = por %p120, %p121
      %p123 = scmp.ne.s32.totalorder %s112, %s115
      %p124 = scmp.eq.s32.totalorder %s18, 1
      %p125 = por %p123, %p124
      %p126 = scmp.ne.s32.totalorder %s115, %s116
      %p127 = scmp.eq.s32.totalorder %s18, 0
      %p128 = por %p126, %p127
      %p129 = scmp.ne.s32.totalorder %s115, %s116
      %p130 = scmp.eq.s32.totalorder %s19, 1
      %p131 = por %p129, %p130
      %p133 = scmp.ne.s32.totalorder %s116, %s132
      %p134 = scmp.eq.s32.totalorder %s19, 0
      %p135 = por %p133, %p134
      %p136 = scmp.le.s32.totalorder 1, %s13
      %p137 = scmp.lt.s32.totalorder %s13, 3
      %p138 = pnand %p136, %p137
      %p139 = pneg %p138
      // Predicated region
      $region9: #{tpu_custom_call.1} parent=5 // pred_check
        _
      $region10: #{tpu_custom_call.1} parent=5 // pred_check_branch
        %141 = sbr.rel (%p138) target = $region12
      $region11: #{tpu_custom_call.1} parent=5 // pred_region
        %s142 = ssub.s32 %s13, 1
        // Predicated region
        $region13: #{tpu_custom_call.1} parent=11 // pred_check
          %p143 = pneg %p60
        $region14: #{tpu_custom_call.1} parent=11 // pred_check_branch
          %145 = sbr.rel (%p143) target = $region16
        $region15: #{tpu_custom_call.1} parent=11 // pred_region
          _
        $region16: #{tpu_custom_call.1} parent=11 // pred_fallthru
          _
        // Predicated region
        $region17: #{tpu_custom_call.1} parent=11 // pred_check
          %p146 = pneg %p81
        $region18: #{tpu_custom_call.1} parent=11 // pred_check_branch
          %148 = sbr.rel (%p146) target = $region20
        $region19: #{tpu_custom_call.1} parent=11 // pred_region
          _
        $region20: #{tpu_custom_call.1} parent=11 // pred_fallthru
          _
        // Predicated region
        $region21: #{tpu_custom_call.1} parent=11 // pred_check
          %p149 = pneg %p102
        $region22: #{tpu_custom_call.1} parent=11 // pred_check_branch
          %151 = sbr.rel (%p149) target = $region24
        $region23: #{tpu_custom_call.1} parent=11 // pred_region
          _
        $region24: #{tpu_custom_call.1} parent=11 // pred_fallthru
          _
      $region12: #{tpu_custom_call.1} parent=5 // pred_fallthru
        _
      %p152 = scmp.lt.s32.totalorder %s13, 2
      // Predicated region
      $region25: #{tpu_custom_call.1} parent=5 // pred_check
        %p153 = pneg %p152
      $region26: #{tpu_custom_call.1} parent=5 // pred_check_branch
        %155 = sbr.rel (%p153) target = $region28
      $region27: #{tpu_custom_call.1} parent=5 // pred_region
        // Predicated region
        $region29: #{tpu_custom_call.1} parent=27 // pred_check
          %p156 = pneg %p33
        $region30: #{tpu_custom_call.1} parent=27 // pred_check_branch
          %158 = sbr.rel (%p156) target = $region32
        $region31: #{tpu_custom_call.1} parent=27 // pred_region
          %s159 = sand.u32 %s23, 1
          %s160 = sand.u32 %s23, 1
          %s161 = smul.addr %s160, 64
          %s162 = scalar_lea.vmem [#allocation2], %s161
          %s163 = smul.u32 2, %s13
          %s164 = smul.addr %s163, 8
          %s165 = scalar_lea.vmem %s0, %s164
          // Predicated region
          $region33: #{tpu_custom_call.1} parent=31 // pred_check
            _
          $region34: #{tpu_custom_call.1} parent=31 // pred_check_branch
            %167 = sbr.rel (0) target = $region36
          $region35: #{tpu_custom_call.1} parent=31 // pred_region
            // Predicated region
            $region37: #{tpu_custom_call.1} parent=35 // pred_check
              _
            $region38: #{tpu_custom_call.1} parent=35 // pred_check_branch
              %169 = sbr.rel (0) target = $region40
            $region39: #{tpu_custom_call.1} parent=35 // pred_region
              // Predicated region
              $region52: #{tpu_custom_call.1} parent=39 // pred_check
                _
              $region53: #{tpu_custom_call.1} parent=39 // pred_check_branch
                %199 = sbr.rel (0) target = $region55
              $region54: #{tpu_custom_call.1} parent=39 // pred_region
                loop: start=0, step=1, limit=1
                $region56: #{tpu_custom_call.1} parent=54 // loop_pre_header
                  _
                $region57: #{tpu_custom_call.1} parent=54 // loop_header
                  %s201 = sphi 0, %s205
                  %p202 = scmp.ge.s32.totalorder %s201, 1
                  %s206 = sphi %s165, %s165
                  %s207 = sphi %s162, %s162
                $region58: #{tpu_custom_call.1} parent=54 // loop_header_branch
                  %204 = sbr.rel (%p202) target = $region62
                $region59: #{tpu_custom_call.1} parent=54 // loop_body
                  %v208 = vld [vmem:[%s206] sm:$0xff]
                  %209 = vst [vmem:[%s207] sm:$0xff] %v208
                  %v210 = vld [vmem:[%s206 + $0x8] sm:$0xff]
                  %211 = vst [vmem:[%s207 + $0x8] sm:$0xff] %v210
                  %v212 = vld [vmem:[%s206 + $0x20] sm:$0xff]
                  %213 = vst [vmem:[%s207 + $0x10] sm:$0xff] %v212
                  %v214 = vld [vmem:[%s206 + $0x28] sm:$0xff]
                  %215 = vst [vmem:[%s207 + $0x18] sm:$0xff] %v214
                  %v216 = vld [vmem:[%s206 + $0x40] sm:$0xff]
                  %217 = vst [vmem:[%s207 + $0x20] sm:$0xff] %v216
                  %v218 = vld [vmem:[%s206 + $0x48] sm:$0xff]
                  %219 = vst [vmem:[%s207 + $0x28] sm:$0xff] %v218
                  %v220 = vld [vmem:[%s206 + $0x60] sm:$0xff]
                  %221 = vst [vmem:[%s207 + $0x30] sm:$0xff] %v220
                  %v222 = vld [vmem:[%s206 + $0x68] sm:$0xff]
                  %223 = vst [vmem:[%s207 + $0x38] sm:$0xff] %v222
                $region60: #{tpu_custom_call.1} parent=54 // loop_footer
                  %s205 = sadd.s32 1, %s201
                $region61: #{tpu_custom_call.1} parent=54 // loop_footer_branch
                  %200 = sbr.rel target = $region57
                $region62: #{tpu_custom_call.1} parent=54 // loop_exit
                  _
              $region55: #{tpu_custom_call.1} parent=39 // pred_fallthru
                _
              // Predicated region
              $region63: #{tpu_custom_call.1} parent=39 // pred_check
                _
              $region64: #{tpu_custom_call.1} parent=39 // pred_check_branch
                %225 = sbr.rel target = $region66
              $region65: #{tpu_custom_call.1} parent=39 // pred_region
                _
              $region66: #{tpu_custom_call.1} parent=39 // pred_fallthru
                _
            $region40: #{tpu_custom_call.1} parent=35 // pred_fallthru
              _
            // Predicated region
            $region41: #{tpu_custom_call.1} parent=35 // pred_check
              _
            $region42: #{tpu_custom_call.1} parent=35 // pred_check_branch
              %171 = sbr.rel target = $region44
            $region43: #{tpu_custom_call.1} parent=35 // pred_region
              %s173 = ssub.s32 256, 1
              loop: start=0, step=1, limit=1
              $region45: #{tpu_custom_call.1} parent=43 // loop_pre_header
                _
              $region46: #{tpu_custom_call.1} parent=43 // loop_header
                %s175 = sphi 0, %s179
                %p176 = scmp.ge.s32.totalorder %s175, 1
                %s180 = sphi %s165, %s165
                %s181 = sphi %s162, %s162
              $region47: #{tpu_custom_call.1} parent=43 // loop_header_branch
                %178 = sbr.rel (%p176) target = $region51
              $region48: #{tpu_custom_call.1} parent=43 // loop_body
                %v182 = vld [vmem:[%s180] sm:%s173]
                %183 = vst [vmem:[%s181] sm:%s173] %v182
                %v184 = vld [vmem:[%s180 + $0x8] sm:%s173]
                %185 = vst [vmem:[%s181 + $0x8] sm:%s173] %v184
                %v186 = vld [vmem:[%s180 + $0x20] sm:%s173]
                %187 = vst [vmem:[%s181 + $0x10] sm:%s173] %v186
                %v188 = vld [vmem:[%s180 + $0x28] sm:%s173]
                %189 = vst [vmem:[%s181 + $0x18] sm:%s173] %v188
                %v190 = vld [vmem:[%s180 + $0x40] sm:%s173]
                %191 = vst [vmem:[%s181 + $0x20] sm:%s173] %v190
                %v192 = vld [vmem:[%s180 + $0x48] sm:%s173]
                %193 = vst [vmem:[%s181 + $0x28] sm:%s173] %v192
                %v194 = vld [vmem:[%s180 + $0x60] sm:%s173]
                %195 = vst [vmem:[%s181 + $0x30] sm:%s173] %v194
                %v196 = vld [vmem:[%s180 + $0x68] sm:%s173]
                %197 = vst [vmem:[%s181 + $0x38] sm:%s173] %v196
              $region49: #{tpu_custom_call.1} parent=43 // loop_footer
                %s179 = sadd.s32 1, %s175
              $region50: #{tpu_custom_call.1} parent=43 // loop_footer_branch
                %174 = sbr.rel target = $region46
              $region51: #{tpu_custom_call.1} parent=43 // loop_exit
                _
            $region44: #{tpu_custom_call.1} parent=35 // pred_fallthru
              _
          $region36: #{tpu_custom_call.1} parent=31 // pred_fallthru
            _
          %226 = vnop
        $region32: #{tpu_custom_call.1} parent=27 // pred_fallthru
          _
      $region28: #{tpu_custom_call.1} parent=5 // pred_fallthru
        _
      %p227 = scmp.le.s32.totalorder 1, %s13
      %p228 = scmp.lt.s32.totalorder %s13, 3
      %p229 = pnand %p227, %p228
      %p230 = pneg %p229
      // Predicated region
      $region67: #{tpu_custom_call.1} parent=5 // pred_check
        _
      $region68: #{tpu_custom_call.1} parent=5 // pred_check_branch
        %232 = sbr.rel (%p229) target = $region70
      $region69: #{tpu_custom_call.1} parent=5 // pred_region
        %s233 = ssub.s32 %s13, 1
        %s234 = sand.u32 %s26, 1
        %s235 = sand.u32 %s26, 1
        %s236 = smul.addr %s235, 64
        %s237 = scalar_lea.vmem [#allocation2], %s236
        // Predicated region
        $region71: #{tpu_custom_call.1} parent=69 // pred_check
          %p238 = pneg %p39
        $region72: #{tpu_custom_call.1} parent=69 // pred_check_branch
          %240 = sbr.rel (%p238) target = $region74
        $region73: #{tpu_custom_call.1} parent=69 // pred_region
          _
        $region74: #{tpu_custom_call.1} parent=69 // pred_fallthru
          _
        %s241 = sand.u32 %s26, 1
        %s242 = sand.u32 %s26, 1
        %s243 = smul.addr %s242, 64
        %s244 = scalar_lea.vmem [#allocation2], %s243
        %p245 = pneg %p39
        %p246 = pneg %p36
        %p247 = pneg %p60
        %p248 = pneg %p57
        %p249 = pneg %p81
        %p250 = pneg %p78
        %p251 = pneg %p102
        %p252 = pneg %p99
        %p253 = pneg %p128
        %p254 = pneg %p125
        %s255 = sand.u32 %s115, 1
        %s256 = scalar_lea.sflag [#allocation4], %s255
        %s257 = sand.u32 %s115, 1
        %s258 = smul.addr %s257, 16
        %s259 = scalar_lea.vmem [#allocation3], %s258
        %s260 = smul.u32 2, %s18
        %s261 = smul.u32 2, %s18
        %v262 = vld [vmem:[%s1] sm:$0x1]
        %v263 = vld [vmem:[%s2] sm:$0x1]
        %v264 = vld [vmem:[%s237] sm:$0xff]
        %v265 = vld [vmem:[%s237 + $0x8] sm:$0xff]
        %vm266 = vcmask 130048
        %v267 = vsel %vm266, %v264, 0.0
        %268 = vadd.xlane.f32.xlu0 %v267
        %v269 = vpop.xlane.xlu0 %268
        %v270 = vsel %vm266, %v265, 0.0
        %271 = vadd.xlane.f32.xlu0 %v270
        %v272 = vpop.xlane.xlu0 %271
        %v273 = vrcp.pop 16.0
        %v274 = vmul.f32 %v269, %v273
        %v275 = vmul.f32 %v272, %v273
        %v276 = vsub.f32 %v264, %v274
        %v277 = vsub.f32 %v265, %v275
        %v278 = vmul.f32 %v276, %v276
        %v279 = vmul.f32 %v277, %v277
        %v280 = vsel %vm266, %v278, 0.0
        %281 = vadd.xlane.f32.xlu0 %v280
        %v282 = vpop.xlane.xlu0 %281
        %v283 = vsel %vm266, %v279, 0.0
        %284 = vadd.xlane.f32.xlu0 %v283
        %v285 = vpop.xlane.xlu0 %284
        %v286 = vmul.f32 %v282, %v273
        %v287 = vmul.f32 %v285, %v273
        %v288 = vadd.f32 %v286, 1e-05
        %v289 = vadd.f32 %v287, 1e-05
        %v290 = vrsqrt.pop %v288
        %v291 = vrsqrt.pop %v289
        %v292 = vmul.f32 %v276, %v290
        %v293 = vmul.f32 %v277, %v291
        %v295 = vlaneseq
        %v296 = vshrl.u32 %v295, 7
        %v297 = vsub.s32 0, %v296
        %v298 = vrot.slane %v262, %v297
        %v300 = vmul.f32 %v292, %v298
        %v301 = vmul.f32 %v293, %v298
        %v303 = vlaneseq
        %v304 = vshrl.u32 %v303, 7
        %v305 = vsub.s32 0, %v304
        %v306 = vrot.slane %v263, %v305
        %v308 = vadd.f32 %v300, %v306
        %v309 = vadd.f32 %v301, %v306
        %v310 = vld [vmem:[%s3] sm:$0xff]
        %v311 = vld [vmem:[%s3 + $0x8] sm:$0xff]
        %s312 = scalar_lea.vmem %s237, 16 [#allocation2]
        %v313 = vld [vmem:[%s312] sm:$0xff]
        %v314 = vld [vmem:[%s312 + $0x8] sm:$0xff]
        %v315 = vsel %vm266, %v313, 0.0
        %316 = vadd.xlane.f32.xlu0 %v315
        %v317 = vpop.xlane.xlu0 %316
        %v318 = vsel %vm266, %v314, 0.0
        %319 = vadd.xlane.f32.xlu0 %v318
        %v320 = vpop.xlane.xlu0 %319
        %v321 = vmul.f32 %v317, %v273
        %v322 = vmul.f32 %v320, %v273
        %v323 = vsub.f32 %v313, %v321
        %v324 = vsub.f32 %v314, %v322
        %v325 = vmul.f32 %v323, %v323
        %v326 = vmul.f32 %v324, %v324
        %v327 = vsel %vm266, %v325, 0.0
        %328 = vadd.xlane.f32.xlu0 %v327
        %v329 = vpop.xlane.xlu0 %328
        %v330 = vsel %vm266, %v326, 0.0
        %331 = vadd.xlane.f32.xlu0 %v330
        %v332 = vpop.xlane.xlu0 %331
        %v333 = vmul.f32 %v329, %v273
        %v334 = vmul.f32 %v332, %v273
        %v335 = vadd.f32 %v333, 1e-05
        %v336 = vadd.f32 %v334, 1e-05
        %v337 = vrsqrt.pop %v335
        %v338 = vrsqrt.pop %v336
        %v339 = vmul.f32 %v323, %v337
        %v340 = vmul.f32 %v324, %v338
        %v341 = vmul.f32 %v339, %v298
        %v342 = vmul.f32 %v340, %v298
        %v343 = vadd.f32 %v341, %v306
        %v344 = vadd.f32 %v342, %v306
        %s345 = scalar_lea.vmem %s3, 16
        %v346 = vld [vmem:[%s345] sm:$0xff]
        %v347 = vld [vmem:[%s345 + $0x8] sm:$0xff]
        %v349 = vsel %vm266, %v343, 0
        %v352 = vsel %vm266, %v344, 0
        %354 = vmatprep.subr.mxu0 0.0
        %355 = vmatpush1.msra.mxu0 0.0
        %356 = vmatprep.subr.mxu0 0.0
        %357 = vmatpush1.msra.mxu0 0.0
        %358 = vmatprep.subr.mxu0 0.0
        %359 = vmatpush1.msra.mxu0 0.0
        %360 = vmatprep.subr.mxu0 0.0
        %361 = vmatpush1.msra.mxu0 0.0
        %362 = vmatprep.subr.mxu0 0.0
        %363 = vmatpush1.msra.mxu0 0.0
        %364 = vmatprep.subr.mxu0 0.0
        %365 = vmatpush1.msra.mxu0 0.0
        %366 = vmatprep.subr.mxu0 0.0
        %367 = vmatpush1.msra.mxu0 0.0
        %368 = vmatprep.subr.mxu0 0.0
        %369 = vmatpush1.msra.mxu0 0.0
        %370 = vmatprep.subr.mxu0 0.0
        %371 = vmatpush1.msra.mxu0 0.0
        %372 = vmatprep.subr.mxu0 0.0
        %373 = vmatpush1.msra.mxu0 0.0
        %374 = vmatprep.subr.mxu0 0.0
        %375 = vmatpush1.msra.mxu0 0.0
        %376 = vmatprep.subr.mxu0 0.0
        %377 = vmatpush1.msra.mxu0 0.0
        %378 = vmatprep.subr.mxu0 0.0
        %379 = vmatpush1.msra.mxu0 0.0
        %380 = vmatprep.subr.mxu0 0.0
        %381 = vmatpush1.msra.mxu0 0.0
        %382 = vmatprep.subr.mxu0 0.0
        %383 = vmatpush1.msra.mxu0 %v347
        %384 = vmatprep.subr.mxu0 0.0
        %385 = vmatpush1.msra.mxu0 %v346
        %386 = vmatprep.subr.mxu0 0.0
        %387 = vmatpush2.msra.mxu0 0.0
        %388 = vmatprep.subr.mxu0 0.0
        %389 = vmatpush2.msra.mxu0 0.0
        %390 = vmatprep.subr.mxu0 0.0
        %391 = vmatpush2.msra.mxu0 0.0
        %392 = vmatprep.subr.mxu0 0.0
        %393 = vmatpush2.msra.mxu0 0.0
        %394 = vmatprep.subr.mxu0 0.0
        %395 = vmatpush2.msra.mxu0 0.0
        %396 = vmatprep.subr.mxu0 0.0
        %397 = vmatpush2.msra.mxu0 0.0
        %398 = vmatprep.subr.mxu0 0.0
        %399 = vmatpush2.msra.mxu0 0.0
        %400 = vmatprep.subr.mxu0 0.0
        %401 = vmatpush2.msra.mxu0 0.0
        %402 = vmatprep.subr.mxu0 0.0
        %403 = vmatpush2.msra.mxu0 0.0
        %404 = vmatprep.subr.mxu0 0.0
        %405 = vmatpush2.msra.mxu0 0.0
        %406 = vmatprep.subr.mxu0 0.0
        %407 = vmatpush2.msra.mxu0 0.0
        %408 = vmatprep.subr.mxu0 0.0
        %409 = vmatpush2.msra.mxu0 0.0
        %410 = vmatprep.subr.mxu0 0.0
        %411 = vmatpush2.msra.mxu0 0.0
        %412 = vmatprep.subr.mxu0 0.0
        %413 = vmatpush2.msra.mxu0 0.0
        %414 = vmatprep.subr.mxu0 0.0
        %415 = vmatpush2.msra.mxu0 0.0
        %416 = vmatprep.subr.mxu0 0.0
        %417 = vmatpush2.msra.mxu0 0.0
        %418 = vmatprep.mubr.f32.mxu0 0.0
        %419 = vmatmul.mubr.f32.gmra.mxu0 %v349
        %v420 = vpop.f32.mrf.mxu0
        %v421 = vadd.f32 0.0, %v420
        %v422 = vpop.f32.mrf.mxu0
        %423 = vmatprep.mubr.f32.mxu0 0.0
        %424 = vmatmul.mubr.f32.gmra.mxu0 %v352
        %v425 = vpop.f32.mrf.mxu0
        %v426 = vadd.f32 0.0, %v425
        %v427 = vpop.f32.mrf.mxu0
        %428 = vdwg.mxu0
        %v430 = vsel %vm266, %v308, 0
        %v433 = vsel %vm266, %v309, 0
        %435 = vmatprep.subr.mxu0 0.0
        %436 = vmatpush1.msra.mxu0 0.0
        %437 = vmatprep.subr.mxu0 0.0
        %438 = vmatpush1.msra.mxu0 0.0
        %439 = vmatprep.subr.mxu0 0.0
        %440 = vmatpush1.msra.mxu0 0.0
        %441 = vmatprep.subr.mxu0 0.0
        %442 = vmatpush1.msra.mxu0 0.0
        %443 = vmatprep.subr.mxu0 0.0
        %444 = vmatpush1.msra.mxu0 0.0
        %445 = vmatprep.subr.mxu0 0.0
        %446 = vmatpush1.msra.mxu0 0.0
        %447 = vmatprep.subr.mxu0 0.0
        %448 = vmatpush1.msra.mxu0 0.0
        %449 = vmatprep.subr.mxu0 0.0
        %450 = vmatpush1.msra.mxu0 0.0
        %451 = vmatprep.subr.mxu0 0.0
        %452 = vmatpush1.msra.mxu0 0.0
        %453 = vmatprep.subr.mxu0 0.0
        %454 = vmatpush1.msra.mxu0 0.0
        %455 = vmatprep.subr.mxu0 0.0
        %456 = vmatpush1.msra.mxu0 0.0
        %457 = vmatprep.subr.mxu0 0.0
        %458 = vmatpush1.msra.mxu0 0.0
        %459 = vmatprep.subr.mxu0 0.0
        %460 = vmatpush1.msra.mxu0 0.0
        %461 = vmatprep.subr.mxu0 0.0
        %462 = vmatpush1.msra.mxu0 0.0
        %463 = vmatprep.subr.mxu0 0.0
        %464 = vmatpush1.msra.mxu0 %v311
        %465 = vmatprep.subr.mxu0 0.0
        %466 = vmatpush1.msra.mxu0 %v310
        %467 = vmatprep.subr.mxu0 0.0
        %468 = vmatpush2.msra.mxu0 0.0
        %469 = vmatprep.subr.mxu0 0.0
        %470 = vmatpush2.msra.mxu0 0.0
        %471 = vmatprep.subr.mxu0 0.0
        %472 = vmatpush2.msra.mxu0 0.0
        %473 = vmatprep.subr.mxu0 0.0
        %474 = vmatpush2.msra.mxu0 0.0
        %475 = vmatprep.subr.mxu0 0.0
        %476 = vmatpush2.msra.mxu0 0.0
        %477 = vmatprep.subr.mxu0 0.0
        %478 = vmatpush2.msra.mxu0 0.0
        %479 = vmatprep.subr.mxu0 0.0
        %480 = vmatpush2.msra.mxu0 0.0
        %481 = vmatprep.subr.mxu0 0.0
        %482 = vmatpush2.msra.mxu0 0.0
        %483 = vmatprep.subr.mxu0 0.0
        %484 = vmatpush2.msra.mxu0 0.0
        %485 = vmatprep.subr.mxu0 0.0
        %486 = vmatpush2.msra.mxu0 0.0
        %487 = vmatprep.subr.mxu0 0.0
        %488 = vmatpush2.msra.mxu0 0.0
        %489 = vmatprep.subr.mxu0 0.0
        %490 = vmatpush2.msra.mxu0 0.0
        %491 = vmatprep.subr.mxu0 0.0
        %492 = vmatpush2.msra.mxu0 0.0
        %493 = vmatprep.subr.mxu0 0.0
        %494 = vmatpush2.msra.mxu0 0.0
        %495 = vmatprep.subr.mxu0 0.0
        %496 = vmatpush2.msra.mxu0 0.0
        %497 = vmatprep.subr.mxu0 0.0
        %498 = vmatpush2.msra.mxu0 0.0
        %499 = vmatprep.mubr.f32.mxu0 0.0
        %500 = vmatmul.mubr.f32.gmra.mxu0 %v430
        %v501 = vpop.f32.mrf.mxu0
        %v502 = vadd.f32 %v421, %v501
        %v503 = vpop.f32.mrf.mxu0
        %504 = vmatprep.mubr.f32.mxu0 0.0
        %505 = vmatmul.mubr.f32.gmra.mxu0 %v433
        %v506 = vpop.f32.mrf.mxu0
        %v507 = vadd.f32 %v426, %v506
        %v508 = vpop.f32.mrf.mxu0
        %509 = vdwg.mxu0
        %s510 = scalar_lea.vmem %s237, 32 [#allocation2]
        %v511 = vld [vmem:[%s510] sm:$0xff]
        %v512 = vld [vmem:[%s510 + $0x8] sm:$0xff]
        %v513 = vsel %vm266, %v511, 0.0
        %514 = vadd.xlane.f32.xlu0 %v513
        %v515 = vpop.xlane.xlu0 %514
        %v516 = vsel %vm266, %v512, 0.0
        %517 = vadd.xlane.f32.xlu0 %v516
        %v518 = vpop.xlane.xlu0 %517
        %v519 = vmul.f32 %v515, %v273
        %v520 = vmul.f32 %v518, %v273
        %v521 = vsub.f32 %v511, %v519
        %v522 = vsub.f32 %v512, %v520
        %v523 = vmul.f32 %v521, %v521
        %v524 = vmul.f32 %v522, %v522
        %v525 = vsel %vm266, %v523, 0.0
        %526 = vadd.xlane.f32.xlu0 %v525
        %v527 = vpop.xlane.xlu0 %526
        %v528 = vsel %vm266, %v524, 0.0
        %529 = vadd.xlane.f32.xlu0 %v528
        %v530 = vpop.xlane.xlu0 %529
        %v531 = vmul.f32 %v527, %v273
        %v532 = vmul.f32 %v530, %v273
        %v533 = vadd.f32 %v531, 1e-05
        %v534 = vadd.f32 %v532, 1e-05
        %v535 = vrsqrt.pop %v533
        %v536 = vrsqrt.pop %v534
        %v537 = vmul.f32 %v521, %v535
        %v538 = vmul.f32 %v522, %v536
        %v539 = vmul.f32 %v537, %v298
        %v540 = vmul.f32 %v538, %v298
        %v541 = vadd.f32 %v539, %v306
        %v542 = vadd.f32 %v540, %v306
        %s543 = scalar_lea.vmem %s3, 32
        %v544 = vld [vmem:[%s543] sm:$0xff]
        %v545 = vld [vmem:[%s543 + $0x8] sm:$0xff]
        %v547 = vsel %vm266, %v541, 0
        %v550 = vsel %vm266, %v542, 0
        %552 = vmatprep.subr.mxu0 0.0
        %553 = vmatpush1.msra.mxu0 0.0
        %554 = vmatprep.subr.mxu0 0.0
        %555 = vmatpush1.msra.mxu0 0.0
        %556 = vmatprep.subr.mxu0 0.0
        %557 = vmatpush1.msra.mxu0 0.0
        %558 = vmatprep.subr.mxu0 0.0
        %559 = vmatpush1.msra.mxu0 0.0
        %560 = vmatprep.subr.mxu0 0.0
        %561 = vmatpush1.msra.mxu0 0.0
        %562 = vmatprep.subr.mxu0 0.0
        %563 = vmatpush1.msra.mxu0 0.0
        %564 = vmatprep.subr.mxu0 0.0
        %565 = vmatpush1.msra.mxu0 0.0
        %566 = vmatprep.subr.mxu0 0.0
        %567 = vmatpush1.msra.mxu0 0.0
        %568 = vmatprep.subr.mxu0 0.0
        %569 = vmatpush1.msra.mxu0 0.0
        %570 = vmatprep.subr.mxu0 0.0
        %571 = vmatpush1.msra.mxu0 0.0
        %572 = vmatprep.subr.mxu0 0.0
        %573 = vmatpush1.msra.mxu0 0.0
        %574 = vmatprep.subr.mxu0 0.0
        %575 = vmatpush1.msra.mxu0 0.0
        %576 = vmatprep.subr.mxu0 0.0
        %577 = vmatpush1.msra.mxu0 0.0
        %578 = vmatprep.subr.mxu0 0.0
        %579 = vmatpush1.msra.mxu0 0.0
        %580 = vmatprep.subr.mxu0 0.0
        %581 = vmatpush1.msra.mxu0 %v545
        %582 = vmatprep.subr.mxu0 0.0
        %583 = vmatpush1.msra.mxu0 %v544
        %584 = vmatprep.subr.mxu0 0.0
        %585 = vmatpush2.msra.mxu0 0.0
        %586 = vmatprep.subr.mxu0 0.0
        %587 = vmatpush2.msra.mxu0 0.0
        %588 = vmatprep.subr.mxu0 0.0
        %589 = vmatpush2.msra.mxu0 0.0
        %590 = vmatprep.subr.mxu0 0.0
        %591 = vmatpush2.msra.mxu0 0.0
        %592 = vmatprep.subr.mxu0 0.0
        %593 = vmatpush2.msra.mxu0 0.0
        %594 = vmatprep.subr.mxu0 0.0
        %595 = vmatpush2.msra.mxu0 0.0
        %596 = vmatprep.subr.mxu0 0.0
        %597 = vmatpush2.msra.mxu0 0.0
        %598 = vmatprep.subr.mxu0 0.0
        %599 = vmatpush2.msra.mxu0 0.0
        %600 = vmatprep.subr.mxu0 0.0
        %601 = vmatpush2.msra.mxu0 0.0
        %602 = vmatprep.subr.mxu0 0.0
        %603 = vmatpush2.msra.mxu0 0.0
        %604 = vmatprep.subr.mxu0 0.0
        %605 = vmatpush2.msra.mxu0 0.0
        %606 = vmatprep.subr.mxu0 0.0
        %607 = vmatpush2.msra.mxu0 0.0
        %608 = vmatprep.subr.mxu0 0.0
        %609 = vmatpush2.msra.mxu0 0.0
        %610 = vmatprep.subr.mxu0 0.0
        %611 = vmatpush2.msra.mxu0 0.0
        %612 = vmatprep.subr.mxu0 0.0
        %613 = vmatpush2.msra.mxu0 0.0
        %614 = vmatprep.subr.mxu0 0.0
        %615 = vmatpush2.msra.mxu0 0.0
        %616 = vmatprep.mubr.f32.mxu0 0.0
        %617 = vmatmul.mubr.f32.gmra.mxu0 %v547
        %v618 = vpop.f32.mrf.mxu0
        %v619 = vadd.f32 0.0, %v618
        %v620 = vpop.f32.mrf.mxu0
        %621 = vmatprep.mubr.f32.mxu0 0.0
        %622 = vmatmul.mubr.f32.gmra.mxu0 %v550
        %v623 = vpop.f32.mrf.mxu0
        %v624 = vadd.f32 0.0, %v623
        %v625 = vpop.f32.mrf.mxu0
        %626 = vdwg.mxu0
        %v627 = vadd.f32 %v502, %v619
        %v628 = vadd.f32 %v507, %v624
        %s629 = scalar_lea.vmem %s237, 48 [#allocation2]
        %v630 = vld [vmem:[%s629] sm:$0xff]
        %v631 = vld [vmem:[%s629 + $0x8] sm:$0xff]
        %v632 = vsel %vm266, %v630, 0.0
        %633 = vadd.xlane.f32.xlu0 %v632
        %v634 = vpop.xlane.xlu0 %633
        %v635 = vsel %vm266, %v631, 0.0
        %636 = vadd.xlane.f32.xlu0 %v635
        %v637 = vpop.xlane.xlu0 %636
        %v638 = vmul.f32 %v634, %v273
        %v639 = vmul.f32 %v637, %v273
        %v640 = vsub.f32 %v630, %v638
        %v641 = vsub.f32 %v631, %v639
        %v642 = vmul.f32 %v640, %v640
        %v643 = vmul.f32 %v641, %v641
        %v644 = vsel %vm266, %v642, 0.0
        %645 = vadd.xlane.f32.xlu0 %v644
        %v646 = vpop.xlane.xlu0 %645
        %v647 = vsel %vm266, %v643, 0.0
        %648 = vadd.xlane.f32.xlu0 %v647
        %v649 = vpop.xlane.xlu0 %648
        %v650 = vmul.f32 %v646, %v273
        %v651 = vmul.f32 %v649, %v273
        %v652 = vadd.f32 %v650, 1e-05
        %v653 = vadd.f32 %v651, 1e-05
        %v654 = vrsqrt.pop %v652
        %v655 = vrsqrt.pop %v653
        %v656 = vmul.f32 %v640, %v654
        %v657 = vmul.f32 %v641, %v655
        %v658 = vmul.f32 %v656, %v298
        %v659 = vmul.f32 %v657, %v298
        %v660 = vadd.f32 %v658, %v306
        %v661 = vadd.f32 %v659, %v306
        %s662 = scalar_lea.vmem %s3, 48
        %v663 = vld [vmem:[%s662] sm:$0xff]
        %v664 = vld [vmem:[%s662 + $0x8] sm:$0xff]
        %v666 = vsel %vm266, %v660, 0
        %v669 = vsel %vm266, %v661, 0
        %671 = vmatprep.subr.mxu0 0.0
        %672 = vmatpush1.msra.mxu0 0.0
        %673 = vmatprep.subr.mxu0 0.0
        %674 = vmatpush1.msra.mxu0 0.0
        %675 = vmatprep.subr.mxu0 0.0
        %676 = vmatpush1.msra.mxu0 0.0
        %677 = vmatprep.subr.mxu0 0.0
        %678 = vmatpush1.msra.mxu0 0.0
        %679 = vmatprep.subr.mxu0 0.0
        %680 = vmatpush1.msra.mxu0 0.0
        %681 = vmatprep.subr.mxu0 0.0
        %682 = vmatpush1.msra.mxu0 0.0
        %683 = vmatprep.subr.mxu0 0.0
        %684 = vmatpush1.msra.mxu0 0.0
        %685 = vmatprep.subr.mxu0 0.0
        %686 = vmatpush1.msra.mxu0 0.0
        %687 = vmatprep.subr.mxu0 0.0
        %688 = vmatpush1.msra.mxu0 0.0
        %689 = vmatprep.subr.mxu0 0.0
        %690 = vmatpush1.msra.mxu0 0.0
        %691 = vmatprep.subr.mxu0 0.0
        %692 = vmatpush1.msra.mxu0 0.0
        %693 = vmatprep.subr.mxu0 0.0
        %694 = vmatpush1.msra.mxu0 0.0
        %695 = vmatprep.subr.mxu0 0.0
        %696 = vmatpush1.msra.mxu0 0.0
        %697 = vmatprep.subr.mxu0 0.0
        %698 = vmatpush1.msra.mxu0 0.0
        %699 = vmatprep.subr.mxu0 0.0
        %700 = vmatpush1.msra.mxu0 %v664
        %701 = vmatprep.subr.mxu0 0.0
        %702 = vmatpush1.msra.mxu0 %v663
        %703 = vmatprep.subr.mxu0 0.0
        %704 = vmatpush2.msra.mxu0 0.0
        %705 = vmatprep.subr.mxu0 0.0
        %706 = vmatpush2.msra.mxu0 0.0
        %707 = vmatprep.subr.mxu0 0.0
        %708 = vmatpush2.msra.mxu0 0.0
        %709 = vmatprep.subr.mxu0 0.0
        %710 = vmatpush2.msra.mxu0 0.0
        %711 = vmatprep.subr.mxu0 0.0
        %712 = vmatpush2.msra.mxu0 0.0
        %713 = vmatprep.subr.mxu0 0.0
        %714 = vmatpush2.msra.mxu0 0.0
        %715 = vmatprep.subr.mxu0 0.0
        %716 = vmatpush2.msra.mxu0 0.0
        %717 = vmatprep.subr.mxu0 0.0
        %718 = vmatpush2.msra.mxu0 0.0
        %719 = vmatprep.subr.mxu0 0.0
        %720 = vmatpush2.msra.mxu0 0.0
        %721 = vmatprep.subr.mxu0 0.0
        %722 = vmatpush2.msra.mxu0 0.0
        %723 = vmatprep.subr.mxu0 0.0
        %724 = vmatpush2.msra.mxu0 0.0
        %725 = vmatprep.subr.mxu0 0.0
        %726 = vmatpush2.msra.mxu0 0.0
        %727 = vmatprep.subr.mxu0 0.0
        %728 = vmatpush2.msra.mxu0 0.0
        %729 = vmatprep.subr.mxu0 0.0
        %730 = vmatpush2.msra.mxu0 0.0
        %731 = vmatprep.subr.mxu0 0.0
        %732 = vmatpush2.msra.mxu0 0.0
        %733 = vmatprep.subr.mxu0 0.0
        %734 = vmatpush2.msra.mxu0 0.0
        %735 = vmatprep.mubr.f32.mxu0 0.0
        %736 = vmatmul.mubr.f32.gmra.mxu0 %v666
        %v737 = vpop.f32.mrf.mxu0
        %v738 = vadd.f32 0.0, %v737
        %v739 = vpop.f32.mrf.mxu0
        %740 = vmatprep.mubr.f32.mxu0 0.0
        %741 = vmatmul.mubr.f32.gmra.mxu0 %v669
        %v742 = vpop.f32.mrf.mxu0
        %v743 = vadd.f32 0.0, %v742
        %v744 = vpop.f32.mrf.mxu0
        %745 = vdwg.mxu0
        %v746 = vadd.f32 %v627, %v738
        %v747 = vadd.f32 %v628, %v743
        %vm748 = vcmask 261120
        %749 = vst.msk [vmem:[%s259] sm:$0xff] %vm748, %v746
        %750 = vst.msk [vmem:[%s259 + $0x8] sm:$0xff] %vm748, %v747
        %s751 = sand.u32 %s115, 1
        %s752 = scalar_lea.sflag [#allocation4], %s751
        %s753 = sand.u32 %s115, 1
        %s754 = smul.addr %s753, 16
        %s755 = scalar_lea.vmem [#allocation3], %s754
        // Predicated region
        $region75: #{tpu_custom_call.1} parent=69 // pred_check
          %p756 = pneg %p125
        $region76: #{tpu_custom_call.1} parent=69 // pred_check_branch
          %758 = sbr.rel (%p756) target = $region78
        $region77: #{tpu_custom_call.1} parent=69 // pred_region
          %s759 = smul.u32 2, %s18
          %s761 = ssub.s32 256, 256
          %762 = vsyncadd %s752, %s761
          %s763 = smul.addr %s759, 128
          %s764 = scalar_lea.hbm %s4, %s763
          %s765 = sshll.u32 %s755, 4
          %s766 = int_to_ptr.vmem [resolvable:$true] %s765
          %771 = dma.vmem_to_hbm [thread:$0]  %s766, 256, %s764, %s752, 128, 128, 8
        $region78: #{tpu_custom_call.1} parent=69 // pred_fallthru
          _
      $region70: #{tpu_custom_call.1} parent=5 // pred_fallthru
        _
      %p772 = scmp.le.s32.totalorder 2, %s13
      // Predicated region
      $region79: #{tpu_custom_call.1} parent=5 // pred_check
        %p773 = pneg %p772
      $region80: #{tpu_custom_call.1} parent=5 // pred_check_branch
        %775 = sbr.rel (%p773) target = $region82
      $region81: #{tpu_custom_call.1} parent=5 // pred_region
        %s776 = ssub.s32 %s13, 2
        // Predicated region
        $region83: #{tpu_custom_call.1} parent=81 // pred_check
          %p777 = pneg %p131
        $region84: #{tpu_custom_call.1} parent=81 // pred_check_branch
          %779 = sbr.rel (%p777) target = $region86
        $region85: #{tpu_custom_call.1} parent=81 // pred_region
          %s780 = sand.u32 %s116, 1
          %s781 = scalar_lea.sflag [#allocation4], %s780
          %s782 = sand.u32 %s116, 1
          %s783 = smul.addr %s782, 16
          %s784 = scalar_lea.vmem [#allocation3], %s783
          %785 = dma.done %s781, 256
        $region86: #{tpu_custom_call.1} parent=81 // pred_fallthru
          _
      $region82: #{tpu_custom_call.1} parent=5 // pred_fallthru
        _
    $region6: #{tpu_custom_call.1} parent=1 // loop_footer
      %s17 = sadd.s32 1, %s13
    $region7: #{tpu_custom_call.1} parent=1 // loop_footer_branch
      %12 = sbr.rel target = $region3
    $region8: #{tpu_custom_call.1} parent=1 // loop_exit
      _
    %786 = vsyncpa [#allocation4], 1
    %s787 = scalar_lea.sflag [#allocation4], 1
    %788 = vsyncpa %s787, 1

</llo_original>
